<compile_context>
chip_gen: v7x
topology: tpu7x:2x2x1
jax: 0.10.0
libtpu: 0.0.40
codegen_flags: <defaults>
</compile_context>

<pallas_src>
import numpy as np
import jax
import jax.numpy as jnp
from jax.experimental import pallas as pl
from jax.experimental.pallas import tpu as pltpu

LANE = 128            # vreg lane width
SUBLANE = 8           # vreg sublane height
NCORES = 2            # leading "parallel" grid axis: 2 TCs on v7x, harmless elsewhere
MAX_TILE_ROWS = 8192  # 8192 x 128 x 4B = 4 MiB f32 per streamed input tile


def _round_up(x, m):
    return ((x + m - 1) // m) * m


def _cdiv(a, b):
    return (a + b - 1) // b


def _to_slab(v, dtype=None):
    """Flatten + zero-pad to a sublane/lane-dense (multiple-of-8, 128) slab."""
    v = jnp.ravel(v)
    if dtype is not None:
        v = v.astype(dtype)
    n = v.shape[0]
    rows = _round_up(max(_cdiv(n, LANE), 1), SUBLANE)
    v = jnp.pad(v, (0, rows * LANE - n))
    return v.reshape(rows, LANE)


def _make_vae_loss_kernel(beta):
    beta_f = float(beta)

    def vae_loss_kernel(x_ref, t_ref, mu_ref, lv_ref, acc_ref, kld_ref):
        step = pl.program_id(1)

        @pl.when(step == 0)
        def _init():
            # Zero this core's resident (1, 8, 128) accumulator block.
            acc_ref[...] = jnp.zeros_like(acc_ref)
            # Gaussian-prior KLD, computed once per core (padding contributes 0:
            # mu=0, logvar=0 -> 1 + 0 - 0 - exp(0) = 0).
            mu = mu_ref[...]
            lv = lv_ref[...]
            kld = (-0.5 * beta_f) * jnp.sum(1.0 + lv - mu * mu - jnp.exp(lv))
            kld_ref[...] = jnp.broadcast_to(kld, kld_ref.shape).astype(jnp.float32)

        # Streamed MSE partial sum: upcast in-kernel, accumulate per-lane on the VPU.
        diff = x_ref[...].astype(jnp.float32) - t_ref[...].astype(jnp.float32)
        sq = diff * diff
        # (tile_rows, 128) -> (tile_rows//8, 8, 128); axis-0 sum is vreg-aligned adds.
        partial = jnp.sum(sq.reshape(-1, SUBLANE, LANE), axis=0)
        acc_ref[...] = acc_ref[...] + partial[None]

    return vae_loss_kernel


def vae_loss(input_arr, target_arr, mu, logvar, *, beta=1.0):
    """Returns (reconstruction_loss, beta * KLD), both as () float32 scalars."""
    # TODO(synk): PyTorch's `criterion` is a generic callable; MSE with 'mean'
    # reduction is the criterion implemented here.
    n_elems = int(np.prod(input_arr.shape))  # MSE 'mean' denominator (unpadded)

    # Lane/sublane-dense slabs; recon tensors keep their native dtype (bf16 stays bf16).
    x2d = _to_slab(input_arr)
    t2d = _to_slab(target_arr)
    mu2d = _to_slab(mu, jnp.float32)
    lv2d = _to_slab(logvar, jnp.float32)

    rows = x2d.shape[0]
    rows_per_core_needed = _cdiv(rows, NCORES)
    tile_rows = min(_round_up(rows_per_core_needed, SUBLANE), MAX_TILE_ROWS)
    rows_per_core = _round_up(rows_per_core_needed, tile_rows)
    padded_rows = rows_per_core * NCORES
    steps = rows_per_core // tile_rows

    if padded_rows != rows:
        pad = padded_rows - rows
        x2d = jnp.pad(x2d, ((0, pad), (0, 0)))
        t2d = jnp.pad(t2d, ((0, pad), (0, 0)))

    kernel = _make_vae_loss_kernel(beta)

    acc, kld = pl.pallas_call(
        kernel,
        out_shape=(
            jax.ShapeDtypeStruct((NCORES, SUBLANE, LANE), jnp.float32),  # per-core MSE acc
            jax.ShapeDtypeStruct((NCORES, 1, LANE), jnp.float32),        # per-core KLD (bcast)
        ),
        grid=(NCORES, steps),
        in_specs=[
            pl.BlockSpec((tile_rows, LANE), lambda c, i: (c * steps + i, 0)),
            pl.BlockSpec((tile_rows, LANE), lambda c, i: (c * steps + i, 0)),
            pl.BlockSpec(mu2d.shape, lambda c, i: (0, 0)),  # fetched once per core
            pl.BlockSpec(lv2d.shape, lambda c, i: (0, 0)),
        ],
        out_specs=(
            pl.BlockSpec((1, SUBLANE, LANE), lambda c, i: (c, 0, 0)),
            pl.BlockSpec((1, 1, LANE), lambda c, i: (c, 0, 0)),
        ),
        compiler_params=pltpu.CompilerParams(
            dimension_semantics=("parallel", "arbitrary"),
            vmem_limit_bytes=48 * 1024 * 1024,
        ),
    )(x2d, t2d, mu2d, lv2d)

    recon = jnp.sum(acc) * (1.0 / float(n_elems))
    return recon, kld[0, 0, 0]


if __name__ == "__main__":
    key = jax.random.PRNGKey(0)
    k1, k2, k3, k4 = jax.random.split(key, 4)

    # Small shapes consistent with a conv-VAE forward: NCHW recon + latent stats.
    B, C, H, W = 2, 4, 16, 16
    Z = 32
    x = jax.random.normal(k1, (B, C, H, W), dtype=jnp.float32)       # decoder output
    target = jax.random.normal(k2, (B, C, H, W), dtype=jnp.float32)  # data
    mu = 0.1 * jax.random.normal(k3, (B, Z), dtype=jnp.float32)
    logvar = 0.1 * jax.random.normal(k4, (B, Z), dtype=jnp.float32)

    recon, kld = vae_loss(x, target, mu, logvar, beta=1.0)
    recon = jax.block_until_ready(recon)
    kld = jax.block_until_ready(kld)

    # Pure-JAX reference check (MSE mean + Gaussian KLD).
    recon_ref = jnp.mean((x - target) ** 2)
    kld_ref = -0.5 * jnp.sum(1.0 + logvar - mu ** 2 - jnp.exp(logvar))
    assert jnp.allclose(recon, recon_ref, rtol=1e-5, atol=1e-5), (recon, recon_ref)
    assert jnp.allclose(kld, kld_ref, rtol=1e-5, atol=1e-5), (kld, kld_ref)

    print("KERNEL_OK")
</pallas_src>

<mosaic_0001>
module attributes {stable_mosaic.version = 11 : i64} {
  func.func @vae_loss_kernel(%arg0: i32, %arg1: i32, %arg2: memref<8x128xf32, #tpu.memory_space<vmem>>, %arg3: memref<8x128xf32, #tpu.memory_space<vmem>>, %arg4: memref<8x128xf32, #tpu.memory_space<vmem>>, %arg5: memref<8x128xf32, #tpu.memory_space<vmem>>, %arg6: memref<1x8x128xf32, #tpu.memory_space<vmem>>, %arg7: memref<1x1x128xf32, #tpu.memory_space<vmem>>) attributes {dimension_semantics = [#tpu.dimension_semantics<parallel>, #tpu.dimension_semantics<arbitrary>], iteration_bounds = array<i64: 2, 1>, scalar_prefetch = 0 : i64, scratch_operands = 0 : i64, tpu.core_type = #tpu.core_type<tc>, window_params = [{transform_indices = @transform_0, window_bounds = array<i64: 8, 128>}, {transform_indices = @transform_1, window_bounds = array<i64: 8, 128>}, {pipeline_mode = #tpu.pipeline_mode<synchronous>, transform_indices = @transform_2, window_bounds = array<i64: 8, 128>}, {pipeline_mode = #tpu.pipeline_mode<synchronous>, transform_indices = @transform_3, window_bounds = array<i64: 8, 128>}, {transform_indices = @transform_4, window_bounds = array<i64: 1, 8, 128>}, {transform_indices = @transform_5, window_bounds = array<i64: 1, 1, 128>}]} {
    %c0_i32 = arith.constant 0 : i32
    %0 = arith.cmpi eq, %arg1, %c0_i32 : i32
    %1 = arith.extui %0 : i1 to i32
    %c0_i32_0 = arith.constant 0 : i32
    %2 = arith.cmpi ne, %1, %c0_i32_0 : i32
    scf.if %2 {
      %cst_10 = arith.constant 0.000000e+00 : f32
      %13 = vector.broadcast %cst_10 : f32 to vector<1x8x128xf32>
      %c0_11 = arith.constant 0 : index
      %c0_12 = arith.constant 0 : index
      %c0_13 = arith.constant 0 : index
      %14 = vector.load %arg6[%c0_11, %c0_12, %c0_13] : memref<1x8x128xf32, #tpu.memory_space<vmem>>, vector<1x8x128xf32>
      tpu.vector_store %arg6[%c0_11, %c0_12, %c0_13], %13 {strides = array<i32>} : memref<1x8x128xf32, #tpu.memory_space<vmem>>, vector<1x8x128xf32>,
      %c0_14 = arith.constant 0 : index
      %c0_15 = arith.constant 0 : index
      %15 = vector.load %arg4[%c0_14, %c0_15] : memref<8x128xf32, #tpu.memory_space<vmem>>, vector<8x128xf32>
      %c0_16 = arith.constant 0 : index
      %c0_17 = arith.constant 0 : index
      %16 = vector.load %arg5[%c0_16, %c0_17] : memref<8x128xf32, #tpu.memory_space<vmem>>, vector<8x128xf32>
      %cst_18 = arith.constant 1.000000e+00 : f32
      %17 = vector.broadcast %cst_18 : f32 to vector<8x128xf32>
      %18 = arith.addf %17, %16 : vector<8x128xf32>
      %19 = arith.mulf %15, %15 : vector<8x128xf32>
      %20 = arith.subf %18, %19 : vector<8x128xf32>
      %21 = math.exp %16 : vector<8x128xf32>
      %22 = arith.subf %20, %21 : vector<8x128xf32>
      %23 = vector.shape_cast %22 : vector<8x128xf32> to vector<1x8x128xf32>
      %cst_19 = arith.constant dense<0.000000e+00> : vector<1xf32>
      %24 = vector.multi_reduction <add>, %23, %cst_19 [1, 2] : vector<1x8x128xf32> to vector<1xf32>
      %25 = vector.shape_cast %24 : vector<1xf32> to vector<1x1x1xf32>
      %26 = vector.extract %25[0, 0, 0] : f32 from vector<1x1x1xf32>
      %cst_20 = arith.constant -5.000000e-01 : f32
      %27 = arith.mulf %cst_20, %26 : f32
      %28 = vector.broadcast %27 : f32 to vector<1x1x128xf32>
      %c0_21 = arith.constant 0 : index
      %c0_22 = arith.constant 0 : index
      %c0_23 = arith.constant 0 : index
      %29 = vector.load %arg7[%c0_21, %c0_22, %c0_23] : memref<1x1x128xf32, #tpu.memory_space<vmem>>, vector<1x1x128xf32>
      tpu.vector_store %arg7[%c0_21, %c0_22, %c0_23], %28 {strides = array<i32>} : memref<1x1x128xf32, #tpu.memory_space<vmem>>, vector<1x1x128xf32>,
    } else {
    }
    %c0 = arith.constant 0 : index
    %c0_1 = arith.constant 0 : index
    %3 = vector.load %arg2[%c0, %c0_1] : memref<8x128xf32, #tpu.memory_space<vmem>>, vector<8x128xf32>
    %c0_2 = arith.constant 0 : index
    %c0_3 = arith.constant 0 : index
    %4 = vector.load %arg3[%c0_2, %c0_3] : memref<8x128xf32, #tpu.memory_space<vmem>>, vector<8x128xf32>
    %5 = arith.subf %3, %4 : vector<8x128xf32>
    %6 = arith.mulf %5, %5 : vector<8x128xf32>
    %7 = vector.shape_cast %6 : vector<8x128xf32> to vector<1x8x128xf32>
    %cst = arith.constant dense<0.000000e+00> : vector<8x128xf32>
    %8 = vector.multi_reduction <add>, %7, %cst [0] : vector<1x8x128xf32> to vector<8x128xf32>
    %c0_4 = arith.constant 0 : index
    %c0_5 = arith.constant 0 : index
    %c0_6 = arith.constant 0 : index
    %9 = vector.load %arg6[%c0_4, %c0_5, %c0_6] : memref<1x8x128xf32, #tpu.memory_space<vmem>>, vector<1x8x128xf32>
    %10 = vector.shape_cast %8 : vector<8x128xf32> to vector<1x8x128xf32>
    %11 = arith.addf %9, %10 : vector<1x8x128xf32>
    %c0_7 = arith.constant 0 : index
    %c0_8 = arith.constant 0 : index
    %c0_9 = arith.constant 0 : index
    %12 = vector.load %arg6[%c0_7, %c0_8, %c0_9] : memref<1x8x128xf32, #tpu.memory_space<vmem>>, vector<1x8x128xf32>
    tpu.vector_store %arg6[%c0_7, %c0_8, %c0_9], %11 {strides = array<i32>} : memref<1x8x128xf32, #tpu.memory_space<vmem>>, vector<1x8x128xf32>,
    return
  }
  func.func @transform_0(%arg0: i32, %arg1: i32) -> (i32, i32) {
    %c1_i32 = arith.constant 1 : i32
    %0 = arith.muli %arg0, %c1_i32 : i32
    %1 = arith.addi %0, %arg1 : i32
    %c0_i32 = arith.constant 0 : i32
    %c0_i32_0 = arith.constant 0 : i32
    return %1, %c0_i32 : i32, i32
  }
  func.func @transform_1(%arg0: i32, %arg1: i32) -> (i32, i32) {
    %c1_i32 = arith.constant 1 : i32
    %0 = arith.muli %arg0, %c1_i32 : i32
    %1 = arith.addi %0, %arg1 : i32
    %c0_i32 = arith.constant 0 : i32
    %c0_i32_0 = arith.constant 0 : i32
    return %1, %c0_i32 : i32, i32
  }
  func.func @transform_2(%arg0: i32, %arg1: i32) -> (i32, i32) {
    %c0_i32 = arith.constant 0 : i32
    %c0_i32_0 = arith.constant 0 : i32
    %c0_i32_1 = arith.constant 0 : i32
    return %c0_i32, %c0_i32_0 : i32, i32
  }
  func.func @transform_3(%arg0: i32, %arg1: i32) -> (i32, i32) {
    %c0_i32 = arith.constant 0 : i32
    %c0_i32_0 = arith.constant 0 : i32
    %c0_i32_1 = arith.constant 0 : i32
    return %c0_i32, %c0_i32_0 : i32, i32
  }
  func.func @transform_4(%arg0: i32, %arg1: i32) -> (i32, i32, i32) {
    %c0_i32 = arith.constant 0 : i32
    %c0_i32_0 = arith.constant 0 : i32
    %c0_i32_1 = arith.constant 0 : i32
    return %arg0, %c0_i32, %c0_i32_0 : i32, i32, i32
  }
  func.func @transform_5(%arg0: i32, %arg1: i32) -> (i32, i32, i32) {
    %c0_i32 = arith.constant 0 : i32
    %c0_i32_0 = arith.constant 0 : i32
    %c0_i32_1 = arith.constant 0 : i32
    return %arg0, %c0_i32, %c0_i32_0 : i32, i32, i32
  }
}

</mosaic_0001>

<llo_original>
// kernel: tpu_custom_call.1
$region0: #{tpu_custom_call.1}
  #allocation0 [shape = 'u32[]', space=smem, size = 0x4, offset = 0x4, fixed_abs, tag = 'smem constant byte address 0x4 - core index']
  #allocation1 [shape = 'u32[144,128]{1,0:T(1,128)}', space=vmem, size = 0x12000, scoped, tag = 'internal scratch']
  %s0 = inlined_call_operand.hbm [shape: f32[16,128], index: 0, kind: input, shape index: {}]
  %s1 = inlined_call_operand.hbm [shape: f32[16,128], index: 1, kind: input, shape index: {}]
  %s2 = inlined_call_operand.hbm [shape: f32[8,128], index: 2, kind: input, shape index: {}]
  %s3 = inlined_call_operand.vmem [shape: f32[8,128], index: 3, kind: input, shape index: {}]
  %s4 = inlined_call_operand.hbm [shape: f32[2,8,128], index: 4, kind: output, shape index: {0}]
  %s5 = inlined_call_operand.hbm [shape: f32[2,1,128], index: 5, kind: output, shape index: {1}]
  %6 = xla_tuple %s4, %s5
  %s7 = sld [smem:[#allocation0]]
  $region73: #{tpu_custom_call.1} parent=0
    _
  %s9 = ssub.s32 1, %s7
  %s10 = scalar_select 0, %s9, %s7
  $region1: #{tpu_custom_call.1} parent=0
    #allocation2 [shape = 'u8[8192]{0}', space=vmem, size = 0x2000, scoped, tag = 'input window, operand 0']
    #allocation3 [shape = 's32[2]{0}', space=sflag, size = 0x8, scoped, tag = 'scoped memory for tpu_custom_call.1']
    #allocation4 [shape = 's32[2]{0}', space=sflag, size = 0x8, scoped, tag = 'scoped memory for tpu_custom_call.1']
    #allocation5 [shape = 'u8[8192]{0}', space=vmem, size = 0x2000, scoped, tag = 'input window, operand 1']
    #allocation6 [shape = 's32[2]{0}', space=sflag, size = 0x8, scoped, tag = 'scoped memory for tpu_custom_call.1']
    #allocation7 [shape = 'u8[4096]{0}', space=vmem, size = 0x1000, scoped, tag = 'input window, operand 2, single buffered']
    #allocation8 [shape = 'u8[8192]{0}', space=vmem, size = 0x2000, scoped, tag = 'output window, operand 0']
    #allocation9 [shape = 'u8[1024]{0}', space=vmem, size = 0x400, scoped, tag = 'output window, operand 1']
    #allocation10 [shape = 's32[2]{0}', space=sflag, size = 0x8, scoped, tag = 'scoped memory for tpu_custom_call.1']
    %11 = vsyncpa [#allocation3], 0
    %s12 = scalar_lea.sflag [#allocation3], 1
    %13 = vsyncpa %s12, 0
    %14 = vsyncpa [#allocation6], 0
    %s15 = scalar_lea.sflag [#allocation6], 1
    %16 = vsyncpa %s15, 0
    %17 = vsyncpa [#allocation4], 0
    %s18 = scalar_lea.sflag [#allocation4], 1
    %19 = vsyncpa %s18, 0
    %20 = vsyncpa [#allocation10], 0
    %s21 = scalar_lea.sflag [#allocation10], 1
    %22 = vsyncpa %s21, 0
    loop: start=0, step=1, limit=4
    $region2: #{tpu_custom_call.1} parent=1 // loop_pre_header
      _
    $region3: #{tpu_custom_call.1} parent=1 // loop_header
      %s24 = sphi 0, %s28
      %p25 = scmp.ge.s32.totalorder %s24, 4
      %s31 = sphi 0, %s43
      %s32 = sphi 0, %s39
      %s33 = sphi 0, %s31
      %s34 = sphi 0, %s32
      %s35 = sphi 0, %s33
      %s36 = sphi 0, %s34
      %s48 = sphi 0, %s50
      %s51 = sphi 0, %s48
      %s52 = sphi 0, %s51
      %s68 = sphi 0, %s52
      %s76 = sphi 0, %s78
      %s79 = sphi 0, %s76
      %s80 = sphi 0, %s79
      %s96 = sphi 0, %s80
      %s100 = sphi 0, %s100
      %s102 = sphi 0, %s100
      %s103 = sphi 0, %s102
      %s117 = sphi 0, %s103
      %s121 = sphi 0, %s121
      %s123 = sphi 0, %s121
      %s124 = sphi 0, %s123
      %s138 = sphi 0, %s124
      %s144 = sphi 0, %s146
      %s147 = sphi 0, %s144
      %s148 = sphi 0, %s147
      %s164 = sphi 0, %s148
      %s170 = sphi 0, %s172
      %s173 = sphi 0, %s170
      %s174 = sphi 0, %s173
      %s190 = sphi 0, %s174
    $region4: #{tpu_custom_call.1} parent=1 // loop_header_branch
      %27 = sbr.rel (%p25) target = $region8
    $region5: #{tpu_custom_call.1} parent=1 // loop_body
      %s29 = ssub.s32 %s24, 1
      %s30 = ssub.s32 %s24, 2
      %s37 = sadd.s32 1, %s32
      %p38 = scmp.ge.s32.totalorder %s37, 1
      %s39 = scalar_select %p38, 0, %s37
      %s40 = sadd.s32 1, %s31
      %s41 = scalar_select %p38, %s40, %s31
      %p42 = scmp.ge.s32.totalorder %s41, 2
      %s43 = scalar_select %p42, 0, %s41
      %s44 = sadd.s32 %s31, %s32
      %s45 = sadd.s32 %s43, %s39
      %s46 = ssub.s32 %s44, %s45
      %p47 = scmp.eq.s32.totalorder %s46, 0
      %s49 = sadd.s32 %s48, 1
      %s50 = scalar_select %p47, %s48, %s49
      %p53 = pneg %p47
      %p54 = scmp.eq.s32.totalorder %s24, 1
      %p55 = por %p53, %p54
      %p56 = scmp.ne.s32.totalorder %s48, %s51
      %p57 = scmp.eq.s32.totalorder %s24, 0
      %p58 = por %p56, %p57
      %p59 = scmp.ne.s32.totalorder %s48, %s51
      %p60 = scmp.eq.s32.totalorder %s29, 1
      %p61 = por %p59, %p60
      %p62 = scmp.ne.s32.totalorder %s51, %s52
      %p63 = scmp.eq.s32.totalorder %s29, 0
      %p64 = por %p62, %p63
      %p65 = scmp.ne.s32.totalorder %s51, %s52
      %p66 = scmp.eq.s32.totalorder %s30, 1
      %p67 = por %p65, %p66
      %p69 = scmp.ne.s32.totalorder %s52, %s68
      %p70 = scmp.eq.s32.totalorder %s30, 0
      %p71 = por %p69, %p70
      %s72 = sadd.s32 %s31, %s32
      %s73 = sadd.s32 %s43, %s39
      %s74 = ssub.s32 %s72, %s73
      %p75 = scmp.eq.s32.totalorder %s74, 0
      %s77 = sadd.s32 %s76, 1
      %s78 = scalar_select %p75, %s76, %s77
      %p81 = pneg %p75
      %p82 = scmp.eq.s32.totalorder %s24, 1
      %p83 = por %p81, %p82
      %p84 = scmp.ne.s32.totalorder %s76, %s79
      %p85 = scmp.eq.s32.totalorder %s24, 0
      %p86 = por %p84, %p85
      %p87 = scmp.ne.s32.totalorder %s76, %s79
      %p88 = scmp.eq.s32.totalorder %s29, 1
      %p89 = por %p87, %p88
      %p90 = scmp.ne.s32.totalorder %s79, %s80
      %p91 = scmp.eq.s32.totalorder %s29, 0
      %p92 = por %p90, %p91
      %p93 = scmp.ne.s32.totalorder %s79, %s80
      %p94 = scmp.eq.s32.totalorder %s30, 1
      %p95 = por %p93, %p94
      %p97 = scmp.ne.s32.totalorder %s80, %s96
      %p98 = scmp.eq.s32.totalorder %s30, 0
      %p99 = por %p97, %p98
      %s101 = sadd.s32 %s100, 1
      %p104 = scmp.eq.s32.totalorder %s24, 1
      %p105 = scmp.ne.s32.totalorder %s100, %s102
      %p106 = scmp.eq.s32.totalorder %s24, 0
      %p107 = por %p105, %p106
      %p108 = scmp.ne.s32.totalorder %s100, %s102
      %p109 = scmp.eq.s32.totalorder %s29, 1
      %p110 = por %p108, %p109
      %p111 = scmp.ne.s32.totalorder %s102, %s103
      %p112 = scmp.eq.s32.totalorder %s29, 0
      %p113 = por %p111, %p112
      %p114 = scmp.ne.s32.totalorder %s102, %s103
      %p115 = scmp.eq.s32.totalorder %s30, 1
      %p116 = por %p114, %p115
      %p118 = scmp.ne.s32.totalorder %s103, %s117
      %p119 = scmp.eq.s32.totalorder %s30, 0
      %p120 = por %p118, %p119
      %s122 = sadd.s32 %s121, 1
      %p125 = scmp.eq.s32.totalorder %s24, 1
      %p126 = scmp.ne.s32.totalorder %s121, %s123
      %p127 = scmp.eq.s32.totalorder %s24, 0
      %p128 = por %p126, %p127
      %p129 = scmp.ne.s32.totalorder %s121, %s123
      %p130 = scmp.eq.s32.totalorder %s29, 1
      %p131 = por %p129, %p130
      %p132 = scmp.ne.s32.totalorder %s123, %s124
      %p133 = scmp.eq.s32.totalorder %s29, 0
      %p134 = por %p132, %p133
      %p135 = scmp.ne.s32.totalorder %s123, %s124
      %p136 = scmp.eq.s32.totalorder %s30, 1
      %p137 = por %p135, %p136
      %p139 = scmp.ne.s32.totalorder %s124, %s138
      %p140 = scmp.eq.s32.totalorder %s30, 0
      %p141 = por %p139, %p140
      %s142 = ssub.s32 %s31, %s43
      %p143 = scmp.eq.s32.totalorder %s142, 0
      %s145 = sadd.s32 %s144, 1
      %s146 = scalar_select %p143, %s144, %s145
      %p149 = pneg %p143
      %p150 = scmp.eq.s32.totalorder %s24, 1
      %p151 = por %p149, %p150
      %p152 = scmp.ne.s32.totalorder %s144, %s147
      %p153 = scmp.eq.s32.totalorder %s24, 0
      %p154 = por %p152, %p153
      %p155 = scmp.ne.s32.totalorder %s144, %s147
      %p156 = scmp.eq.s32.totalorder %s29, 1
      %p157 = por %p155, %p156
      %p158 = scmp.ne.s32.totalorder %s147, %s148
      %p159 = scmp.eq.s32.totalorder %s29, 0
      %p160 = por %p158, %p159
      %p161 = scmp.ne.s32.totalorder %s147, %s148
      %p162 = scmp.eq.s32.totalorder %s30, 1
      %p163 = por %p161, %p162
      %p165 = scmp.ne.s32.totalorder %s148, %s164
      %p166 = scmp.eq.s32.totalorder %s30, 0
      %p167 = por %p165, %p166
      %s168 = ssub.s32 %s31, %s43
      %p169 = scmp.eq.s32.totalorder %s168, 0
      %s171 = sadd.s32 %s170, 1
      %s172 = scalar_select %p169, %s170, %s171
      %p175 = pneg %p169
      %p176 = scmp.eq.s32.totalorder %s24, 1
      %p177 = por %p175, %p176
      %p178 = scmp.ne.s32.totalorder %s170, %s173
      %p179 = scmp.eq.s32.totalorder %s24, 0
      %p180 = por %p178, %p179
      %p181 = scmp.ne.s32.totalorder %s170, %s173
      %p182 = scmp.eq.s32.totalorder %s29, 1
      %p183 = por %p181, %p182
      %p184 = scmp.ne.s32.totalorder %s173, %s174
      %p185 = scmp.eq.s32.totalorder %s29, 0
      %p186 = por %p184, %p185
      %p187 = scmp.ne.s32.totalorder %s173, %s174
      %p188 = scmp.eq.s32.totalorder %s30, 1
      %p189 = por %p187, %p188
      %p191 = scmp.ne.s32.totalorder %s174, %s190
      %p192 = scmp.eq.s32.totalorder %s30, 0
      %p193 = por %p191, %p192
      %p194 = scmp.le.s32.totalorder 1, %s24
      %p195 = scmp.lt.s32.totalorder %s24, 3
      %p196 = pnand %p194, %p195
      %p197 = pneg %p196
      // Predicated region
      $region9: #{tpu_custom_call.1} parent=5 // pred_check
        _
      $region10: #{tpu_custom_call.1} parent=5 // pred_check_branch
        %199 = sbr.rel (%p196) target = $region12
      $region11: #{tpu_custom_call.1} parent=5 // pred_region
        %s200 = ssub.s32 %s24, 1
        // Predicated region
        $region13: #{tpu_custom_call.1} parent=11 // pred_check
          %p201 = pneg %p113
        $region14: #{tpu_custom_call.1} parent=11 // pred_check_branch
          %203 = sbr.rel (%p201) target = $region16
        $region15: #{tpu_custom_call.1} parent=11 // pred_region
          %s205 = ssub.s32 128, 128
          %206 = vsyncadd [#allocation6], %s205
          %s208 = sshll.u32 [#allocation7], 4
          %s209 = int_to_ptr.vmem [resolvable:$true] %s208
          %211 = dma.hbm_to_vmem [thread:$0]  %s2, 128, %s209, [#allocation6]
        $region16: #{tpu_custom_call.1} parent=11 // pred_fallthru
          _
        // Predicated region
        $region17: #{tpu_custom_call.1} parent=11 // pred_check
          %p212 = pneg %p134
        $region18: #{tpu_custom_call.1} parent=11 // pred_check_branch
          %214 = sbr.rel (%p212) target = $region20
        $region19: #{tpu_custom_call.1} parent=11 // pred_region
          _
        $region20: #{tpu_custom_call.1} parent=11 // pred_fallthru
          _
      $region12: #{tpu_custom_call.1} parent=5 // pred_fallthru
        _
      %p215 = scmp.lt.s32.totalorder %s24, 2
      // Predicated region
      $region21: #{tpu_custom_call.1} parent=5 // pred_check
        %p216 = pneg %p215
      $region22: #{tpu_custom_call.1} parent=5 // pred_check_branch
        %218 = sbr.rel (%p216) target = $region24
      $region23: #{tpu_custom_call.1} parent=5 // pred_region
        // Predicated region
        $region25: #{tpu_custom_call.1} parent=23 // pred_check
          %p219 = pneg %p58
        $region26: #{tpu_custom_call.1} parent=23 // pred_check_branch
          %221 = sbr.rel (%p219) target = $region28
        $region27: #{tpu_custom_call.1} parent=23 // pred_region
          %s222 = sand.u32 %s48, 1
          %s223 = scalar_lea.sflag [#allocation3], %s222
          %s224 = sand.u32 %s48, 1
          %s225 = smul.addr %s224, 8
          %s226 = scalar_lea.vmem [#allocation2], %s225
          %s227 = sadd.s32 %s31, %s32
          %s229 = ssub.s32 128, 128
          %230 = vsyncadd %s223, %s229
          %s231 = smul.addr %s227, 128
          %s232 = scalar_lea.hbm %s0, %s231
          %s234 = sshll.u32 %s226, 4
          %s235 = int_to_ptr.vmem [resolvable:$true] %s234
          %237 = dma.hbm_to_vmem [thread:$0]  %s232, 128, %s235, %s223
        $region28: #{tpu_custom_call.1} parent=23 // pred_fallthru
          _
        // Predicated region
        $region29: #{tpu_custom_call.1} parent=23 // pred_check
          %p238 = pneg %p86
        $region30: #{tpu_custom_call.1} parent=23 // pred_check_branch
          %240 = sbr.rel (%p238) target = $region32
        $region31: #{tpu_custom_call.1} parent=23 // pred_region
          %s241 = sand.u32 %s24, 1
          %s242 = scalar_lea.sflag [#allocation6], %s241
          %s243 = sand.u32 %s76, 1
          %s244 = smul.addr %s243, 8
          %s245 = scalar_lea.vmem [#allocation5], %s244
          %s246 = sadd.s32 %s31, %s32
          %s248 = ssub.s32 128, 128
          %249 = vsyncadd %s242, %s248
          %s250 = smul.addr %s246, 128
          %s251 = scalar_lea.hbm %s1, %s250
          %s253 = sshll.u32 %s245, 4
          %s254 = int_to_ptr.vmem [resolvable:$true] %s253
          %256 = dma.hbm_to_vmem [thread:$0]  %s251, 128, %s254, %s242
        $region32: #{tpu_custom_call.1} parent=23 // pred_fallthru
          _
      $region24: #{tpu_custom_call.1} parent=5 // pred_fallthru
        _
      %p257 = scmp.le.s32.totalorder 1, %s24
      %p258 = scmp.lt.s32.totalorder %s24, 3
      %p259 = pnand %p257, %p258
      %p260 = pneg %p259
      // Predicated region
      $region33: #{tpu_custom_call.1} parent=5 // pred_check
        _
      $region34: #{tpu_custom_call.1} parent=5 // pred_check_branch
        %262 = sbr.rel (%p259) target = $region36
      $region35: #{tpu_custom_call.1} parent=5 // pred_region
        %s263 = ssub.s32 %s24, 1
        %s264 = sand.u32 %s51, 1
        %s265 = scalar_lea.sflag [#allocation3], %s264
        %s266 = sand.u32 %s51, 1
        %s267 = smul.addr %s266, 8
        %s268 = scalar_lea.vmem [#allocation2], %s267
        // Predicated region
        $region37: #{tpu_custom_call.1} parent=35 // pred_check
          %p269 = pneg %p64
        $region38: #{tpu_custom_call.1} parent=35 // pred_check_branch
          %271 = sbr.rel (%p269) target = $region40
        $region39: #{tpu_custom_call.1} parent=35 // pred_region
          %272 = dma.done %s265, 128
        $region40: #{tpu_custom_call.1} parent=35 // pred_fallthru
          _
        %s273 = sand.u32 %s29, 1
        %s274 = scalar_lea.sflag [#allocation6], %s273
        %s275 = sand.u32 %s79, 1
        %s276 = smul.addr %s275, 8
        %s277 = scalar_lea.vmem [#allocation5], %s276
        // Predicated region
        $region41: #{tpu_custom_call.1} parent=35 // pred_check
          %p278 = pneg %p92
        $region42: #{tpu_custom_call.1} parent=35 // pred_check_branch
          %280 = sbr.rel (%p278) target = $region44
        $region43: #{tpu_custom_call.1} parent=35 // pred_region
          %281 = dma.done %s274, 128
        $region44: #{tpu_custom_call.1} parent=35 // pred_fallthru
          _
        // Predicated region
        $region45: #{tpu_custom_call.1} parent=35 // pred_check
          %p282 = pneg %p113
        $region46: #{tpu_custom_call.1} parent=35 // pred_check_branch
          %284 = sbr.rel (%p282) target = $region48
        $region47: #{tpu_custom_call.1} parent=35 // pred_region
          %285 = dma.done [#allocation6], 128
        $region48: #{tpu_custom_call.1} parent=35 // pred_fallthru
          _
        %s286 = sand.u32 %s51, 1
        %s287 = scalar_lea.sflag [#allocation3], %s286
        %s288 = sand.u32 %s51, 1
        %s289 = smul.addr %s288, 8
        %s290 = scalar_lea.vmem [#allocation2], %s289
        %p291 = pneg %p64
        %p292 = pneg %p61
        %s293 = sand.u32 %s29, 1
        %s294 = scalar_lea.sflag [#allocation6], %s293
        %s295 = sand.u32 %s79, 1
        %s296 = smul.addr %s295, 8
        %s297 = scalar_lea.vmem [#allocation5], %s296
        %p298 = pneg %p92
        %p299 = pneg %p89
        %p300 = pneg %p113
        %p301 = pneg %p110
        %p302 = pneg %p134
        %p303 = pneg %p131
        %p304 = pneg %p160
        %p305 = pneg %p157
        %s306 = sand.u32 %s147, 1
        %s307 = scalar_lea.sflag [#allocation4], %s306
        %s308 = sand.u32 %s147, 1
        %s309 = smul.addr %s308, 8
        %s310 = scalar_lea.vmem [#allocation8], %s309
        %p311 = pneg %p186
        %p312 = pneg %p183
        %s313 = sand.u32 %s173, 1
        %s314 = scalar_lea.sflag [#allocation10], %s313
        %s315 = sand.u32 %s173, 1
        %s316 = scalar_lea.vmem [#allocation9], %s315
        %s317 = sadd.s32 %s33, %s34
        %s318 = sadd.s32 %s33, %s34
        %p319 = scmp.eq.s32.totalorder %s34, 0
        // Predicated region
        $region49: #{tpu_custom_call.1} parent=35 // pred_check
          %p320 = pneg %p319
        $region50: #{tpu_custom_call.1} parent=35 // pred_check_branch
          %322 = sbr.rel (%p320) target = $region52
        $region51: #{tpu_custom_call.1} parent=35 // pred_region
          %323 = vst [vmem:[%s310] sm:$0xff] 0.0
          %v324 = vld [vmem:[#allocation7] sm:$0xff]
          %v325 = vld [vmem:[%s3] sm:$0xff]
          %v326 = vadd.f32 %v325, 1.0
          %v327 = vmul.f32 %v324, %v324
          %v328 = vsub.f32 %v326, %v327
          %v329 = vmul.f32 %v325, 1.442695
          %v330 = vpow.pop %v329
          %v331 = vsub.f32 %v328, %v330
          %332 = vadd.xlane.f32.xlu0 %v331
          %v333 = vpop.xlane.xlu0 %332
          %v334 = vrot.slane %v333, 4
          %v335 = vadd.f32 %v333, %v334
          %v336 = vrot.slane %v335, 2
          %v337 = vadd.f32 %v335, %v336
          %v338 = vrot.slane %v337, 1
          %v339 = vadd.f32 %v337, %v338
          %s340 = vtos %v339
          %s341 = smul.f32 %s340, -0.5
          %v342 = vstv %s341
          %343 = vst [vmem:[%s316] sm:$0x1] %v342
        $region52: #{tpu_custom_call.1} parent=35 // pred_fallthru
          _
        %v344 = vld [vmem:[%s268] sm:$0xff]
        %v345 = vld [vmem:[%s277] sm:$0xff]
        %v346 = vsub.f32 %v344, %v345
        %v347 = vmul.f32 %v346, %v346
        %v348 = vadd.f32 %v347, 0.0
        %v349 = vld [vmem:[%s310] sm:$0xff]
        %v350 = vadd.f32 %v349, %v348
        %351 = vst [vmem:[%s310] sm:$0xff] %v350
        %s352 = sand.u32 %s147, 1
        %s353 = scalar_lea.sflag [#allocation4], %s352
        %s354 = sand.u32 %s147, 1
        %s355 = smul.addr %s354, 8
        %s356 = scalar_lea.vmem [#allocation8], %s355
        %s357 = sand.u32 %s173, 1
        %s358 = scalar_lea.sflag [#allocation10], %s357
        %s359 = sand.u32 %s173, 1
        %s360 = scalar_lea.vmem [#allocation9], %s359
        // Predicated region
        $region53: #{tpu_custom_call.1} parent=35 // pred_check
          %p361 = pneg %p157
        $region54: #{tpu_custom_call.1} parent=35 // pred_check_branch
          %363 = sbr.rel (%p361) target = $region56
        $region55: #{tpu_custom_call.1} parent=35 // pred_region
          %s365 = ssub.s32 128, 128
          %366 = vsyncadd %s353, %s365
          %s367 = smul.addr %s33, 128
          %s368 = scalar_lea.hbm %s4, %s367
          %s370 = sshll.u32 %s356, 4
          %s371 = int_to_ptr.vmem [resolvable:$true] %s370
          %373 = dma.vmem_to_hbm [thread:$0]  %s371, 128, %s368, %s353
        $region56: #{tpu_custom_call.1} parent=35 // pred_fallthru
          _
        // Predicated region
        $region57: #{tpu_custom_call.1} parent=35 // pred_check
          %p374 = pneg %p183
        $region58: #{tpu_custom_call.1} parent=35 // pred_check_branch
          %376 = sbr.rel (%p374) target = $region60
        $region59: #{tpu_custom_call.1} parent=35 // pred_region
          %s378 = ssub.s32 16, 16
          %379 = vsyncadd %s358, %s378
          %s380 = smul.addr %s33, 16
          %s381 = scalar_lea.hbm %s5, %s380
          %s383 = sshll.u32 %s360, 4
          %s384 = int_to_ptr.vmem [resolvable:$true] %s383
          %386 = dma.vmem_to_hbm [thread:$0]  %s384, 16, %s381, %s358
        $region60: #{tpu_custom_call.1} parent=35 // pred_fallthru
          _
      $region36: #{tpu_custom_call.1} parent=5 // pred_fallthru
        _
      %p387 = scmp.le.s32.totalorder 2, %s24
      // Predicated region
      $region61: #{tpu_custom_call.1} parent=5 // pred_check
        %p388 = pneg %p387
      $region62: #{tpu_custom_call.1} parent=5 // pred_check_branch
        %390 = sbr.rel (%p388) target = $region64
      $region63: #{tpu_custom_call.1} parent=5 // pred_region
        %s391 = ssub.s32 %s24, 2
        // Predicated region
        $region65: #{tpu_custom_call.1} parent=63 // pred_check
          %p392 = pneg %p163
        $region66: #{tpu_custom_call.1} parent=63 // pred_check_branch
          %394 = sbr.rel (%p392) target = $region68
        $region67: #{tpu_custom_call.1} parent=63 // pred_region
          %s395 = sand.u32 %s148, 1
          %s396 = scalar_lea.sflag [#allocation4], %s395
          %s397 = sand.u32 %s148, 1
          %s398 = smul.addr %s397, 8
          %s399 = scalar_lea.vmem [#allocation8], %s398
          %400 = dma.done %s396, 128
        $region68: #{tpu_custom_call.1} parent=63 // pred_fallthru
          _
        // Predicated region
        $region69: #{tpu_custom_call.1} parent=63 // pred_check
          %p401 = pneg %p189
        $region70: #{tpu_custom_call.1} parent=63 // pred_check_branch
          %403 = sbr.rel (%p401) target = $region72
        $region71: #{tpu_custom_call.1} parent=63 // pred_region
          %s404 = sand.u32 %s174, 1
          %s405 = scalar_lea.sflag [#allocation10], %s404
          %s406 = sand.u32 %s174, 1
          %s407 = scalar_lea.vmem [#allocation9], %s406
          %408 = dma.done %s405, 16
        $region72: #{tpu_custom_call.1} parent=63 // pred_fallthru
          _
      $region64: #{tpu_custom_call.1} parent=5 // pred_fallthru
        _
    $region6: #{tpu_custom_call.1} parent=1 // loop_footer
      %s28 = sadd.s32 1, %s24
    $region7: #{tpu_custom_call.1} parent=1 // loop_footer_branch
      %23 = sbr.rel target = $region3
    $region8: #{tpu_custom_call.1} parent=1 // loop_exit
      _
    %409 = vsyncpa [#allocation3], 1
    %s410 = scalar_lea.sflag [#allocation3], 1
    %411 = vsyncpa %s410, 1
    %412 = vsyncpa [#allocation6], 1
    %s413 = scalar_lea.sflag [#allocation6], 1
    %414 = vsyncpa %s413, 1
    %415 = vsyncpa [#allocation4], 1
    %s416 = scalar_lea.sflag [#allocation4], 1
    %417 = vsyncpa %s416, 1
    %418 = vsyncpa [#allocation10], 1
    %s419 = scalar_lea.sflag [#allocation10], 1
    %420 = vsyncpa %s419, 1

</llo_original>
